<compile_context>
chip_gen: v5e
topology: v5e:2x2
jax: 0.10.0
libtpu: 0.0.40
codegen_flags: <defaults>
</compile_context>

<pallas_src>
import functools

import jax
import jax.numpy as jnp
from jax.experimental import pallas as pl
from jax.experimental.pallas import tpu as pltpu

_EPS = 1e-6
_LANE = 512                      # lane-dense last dim (multiple of 128)
_MAX_TILE_ROWS = 256             # 256 x 512 f32 = 512 KiB per input tile
_TILE_BYTES = 1 << 20            # ~1 MiB per input tile in the masked path
_VMEM_LIMIT = 32 * 1024 * 1024   # safe on v5e/v6e/v7x; tiles stay far below it


def _round_up(x, m):
    return ((x + m - 1) // m) * m


# --------------------------------------------------------------------------
# Default path: mask is all ones -> mean of (sigmoid(pred) - target)^2
# --------------------------------------------------------------------------
def _mse_sum_kernel(pred_ref, target_ref, num_ref):
    s = pl.program_id(1)

    @pl.when(s == 0)
    def _():
        num_ref[...] = jnp.zeros_like(num_ref)

    p = jax.nn.sigmoid(pred_ref[...].astype(jnp.float32))   # (TR, LANE)
    t = target_ref[...].astype(jnp.float32)
    d = p - t
    sq = d * d
    tr, lane = sq.shape
    # (TR, LANE) -> (TR//8, 8, LANE) is layout-preserving; the axis-0 reduce is
    # pure vreg-wise VPU adds (no cross-lane XLU reduce, no scalar RAW dep).
    num_ref[...] += sq.reshape(tr // 8, 8, lane).sum(axis=0)[None, :, :]


def _mse_mean_dense(pred, target, eps):
    total = int(pred.size)
    groups = 2   # split row range across TensorCores on v7x; harmless on 1-TC chips
    p = pred.reshape(-1)
    t = target.reshape(-1)

    rows_needed = pl.cdiv(total, _LANE)
    tile_rows = min(_MAX_TILE_ROWS,
                    max(8, _round_up(pl.cdiv(rows_needed, groups), 8)))
    chunk = groups * tile_rows * _LANE
    padded = _round_up(total, chunk)
    if padded != total:
        # sigmoid(0.0) == 0.5 exactly, so padded elements contribute exactly 0.
        p = jnp.pad(p, (0, padded - total), constant_values=0.0)
        t = jnp.pad(t, (0, padded - total), constant_values=0.5)
    rows = padded // _LANE
    steps = rows // (groups * tile_rows)

    p2 = p.reshape(rows, _LANE)
    t2 = t.reshape(rows, _LANE)

    num_part = pl.pallas_call(
        _mse_sum_kernel,
        out_shape=jax.ShapeDtypeStruct((groups, 8, _LANE), jnp.float32),
        grid_spec=pltpu.PrefetchScalarGridSpec(
            num_scalar_prefetch=0,
            grid=(groups, steps),
            in_specs=[
                pl.BlockSpec((tile_rows, _LANE), lambda g, s: (g * steps + s, 0)),
                pl.BlockSpec((tile_rows, _LANE), lambda g, s: (g * steps + s, 0)),
            ],
            out_specs=pl.BlockSpec((1, 8, _LANE), lambda g, s: (g, 0, 0)),
        ),
        compiler_params=pltpu.CompilerParams(
            dimension_semantics=("parallel", "arbitrary"),
            vmem_limit_bytes=_VMEM_LIMIT,
        ),
    )(p2, t2)

    num = jnp.sum(num_part)
    den = jnp.float32(total)      # all-ones mask -> trace-time constant count
    return num / (den + eps)


# --------------------------------------------------------------------------
# Masked path: visibility mask (broadcast over C) and/or ignore_index mask
# --------------------------------------------------------------------------
def _masked_center_kernel(*refs, min_visibility, ignore_index, use_vis):
    if use_vis:
        pred_ref, target_ref, vis_ref, num_ref, den_ref = refs
    else:
        pred_ref, target_ref, num_ref, den_ref = refs

    ci = pl.program_id(1)

    @pl.when(ci == 0)
    def _():
        num_ref[...] = jnp.zeros_like(num_ref)
        den_ref[...] = jnp.zeros_like(den_ref)

    p = jax.nn.sigmoid(pred_ref[...].astype(jnp.float32))   # (1, tc, HW)
    t = target_ref[...].astype(jnp.float32)
    sq = (p - t) * (p - t)
    tc = sq.shape[1]

    if use_vis:
        vis_m = (vis_ref[...] >= min_visibility).astype(jnp.float32)   # (1,1,HW)

    if ignore_index is not None:
        mask = (t != ignore_index).astype(jnp.float32)                 # (1,tc,HW)
        if use_vis:
            mask = mask * vis_m
        num_ref[...] += (sq * mask).sum(axis=1, keepdims=True)
        den_ref[...] += mask.sum(axis=1, keepdims=True)
    else:
        # Visibility-only mask is channel-independent: factor it out of the sum
        # (saves a full-tile multiply and avoids materializing a (tc, HW) mask).
        num_ref[...] += sq.sum(axis=1, keepdims=True) * vis_m
        den_ref[...] += jnp.float32(tc) * vis_m


def _pick_channel_tile(C, HW):
    # tc must divide C and be either C or a multiple of 8 (sublane alignment).
    legal = [c for c in range(1, C + 1)
             if C % c == 0 and (c == C or c % 8 == 0)]
    fitting = [c for c in legal if c * HW * 4 <= _TILE_BYTES]
    return max(fitting) if fitting else min(legal)


def _mse_mean_masked(pred, target, visibility, *, min_visibility, ignore_index, eps):
    B, C, H, W = pred.shape
    HW = H * W
    p = pred.reshape(B, C, HW)
    t = target.reshape(B, C, HW)

    # Note: for extremely large H*W the lane axis could additionally be tiled;
    # typical center heads fit comfortably with full-HW lanes.
    tc = _pick_channel_tile(C, HW)
    c_chunks = C // tc
    use_vis = min_visibility > 0

    in_specs = [
        pl.BlockSpec((1, tc, HW), lambda b, ci: (b, ci, 0)),
        pl.BlockSpec((1, tc, HW), lambda b, ci: (b, ci, 0)),
    ]
    args = [p, t]
    if use_vis:
        in_specs.append(pl.BlockSpec((1, 1, HW), lambda b, ci: (b, 0, 0)))
        args.append(visibility.reshape(B, 1, HW))

    kernel = functools.partial(
        _masked_center_kernel,
        min_visibility=min_visibility,
        ignore_index=ignore_index,
        use_vis=use_vis,
    )

    num_part, den_part = pl.pallas_call(
        kernel,
        out_shape=(jax.ShapeDtypeStruct((B, 1, HW), jnp.float32),
                   jax.ShapeDtypeStruct((B, 1, HW), jnp.float32)),
        grid_spec=pltpu.PrefetchScalarGridSpec(
            num_scalar_prefetch=0,
            grid=(B, c_chunks),
            in_specs=in_specs,
            out_specs=(pl.BlockSpec((1, 1, HW), lambda b, ci: (b, 0, 0)),
                       pl.BlockSpec((1, 1, HW), lambda b, ci: (b, 0, 0))),
        ),
        compiler_params=pltpu.CompilerParams(
            dimension_semantics=("parallel", "arbitrary"),
            vmem_limit_bytes=_VMEM_LIMIT,
        ),
    )(*args)

    return jnp.sum(num_part) / (jnp.sum(den_part) + eps)


# --------------------------------------------------------------------------
# Public API (mirrors SpatialRegressionLoss(norm=2) / CenterLoss.forward)
# --------------------------------------------------------------------------
def spatial_regression_loss_pallas(pred, target, visibility, *,
                                   min_visibility=0, ignore_index=None,
                                   eps=_EPS):
    assert pred.ndim == 4, 'Must be a 4D tensor'
    if min_visibility == 0 and ignore_index is None:
        return _mse_mean_dense(pred, target, eps)
    return _mse_mean_masked(pred, target, visibility,
                            min_visibility=min_visibility,
                            ignore_index=ignore_index, eps=eps)


def center_loss_pallas(prediction, batch, *, key='',
                       min_visibility=0, ignore_index=None):
    """Mirror of CenterLoss.forward (norm=2); sigmoid applied inside the kernel."""
    center_key = f'{key}_center'
    pred = prediction[center_key]
    target = batch[center_key]
    visibility = batch[f'{key}_visibility']
    return spatial_regression_loss_pallas(
        pred, target, visibility,
        min_visibility=min_visibility, ignore_index=ignore_index)


# ---------------- pure-JAX reference (for correctness check) ----------------
def center_loss_ref(prediction, batch, *, key='',
                    min_visibility=0, ignore_index=None, eps=_EPS):
    pred = jax.nn.sigmoid(prediction[f'{key}_center'])
    target = batch[f'{key}_center']
    visibility = batch[f'{key}_visibility']
    mask = jnp.ones_like(target, dtype=bool)
    if min_visibility > 0:
        mask = mask & (visibility >= min_visibility)[:, None]
    if ignore_index is not None:
        mask = mask & (target != ignore_index)
    maskf = mask.astype(jnp.float32)
    loss = (pred - target) ** 2
    return jnp.sum(loss * maskf) / (jnp.sum(maskf) + eps)


if __name__ == "__main__":
    B, C, H, W = 2, 4, 16, 16
    k0 = jax.random.PRNGKey(0)
    k1, k2, k3 = jax.random.split(k0, 3)

    pred_logits = jax.random.normal(k1, (B, C, H, W), dtype=jnp.float32)
    target = jax.random.uniform(k2, (B, C, H, W), dtype=jnp.float32)
    # Plant exact sentinel values so the ignore_index path is actually exercised.
    target = target.at[:, 1, :4, :4].set(-1.0)
    visibility = jax.random.randint(k3, (B, H, W), 0, 4, dtype=jnp.int32)

    prediction = {'_center': pred_logits}
    batch = {'_center': target, '_visibility': visibility}

    configs = [
        dict(min_visibility=0, ignore_index=None),   # default (dense) path
        dict(min_visibility=2, ignore_index=None),   # visibility mask
        dict(min_visibility=0, ignore_index=-1.0),   # ignore_index only
        dict(min_visibility=2, ignore_index=-1.0),   # both masks
    ]
    for cfg in configs:
        out = center_loss_pallas(prediction, batch, key='', **cfg)
        out = jax.block_until_ready(out)
        ref = center_loss_ref(prediction, batch, key='', **cfg)
        assert jnp.allclose(out, ref, rtol=1e-5, atol=1e-6), (cfg, out, ref)

    print("KERNEL_OK")
</pallas_src>

<mosaic_0001>
module attributes {stable_mosaic.version = 11 : i64} {
  func.func @_mse_sum_kernel(%arg0: i32, %arg1: i32, %arg2: memref<8x512xf32, #tpu.memory_space<vmem>>, %arg3: memref<8x512xf32, #tpu.memory_space<vmem>>, %arg4: memref<1x8x512xf32, #tpu.memory_space<vmem>>) attributes {dimension_semantics = [#tpu.dimension_semantics<parallel>, #tpu.dimension_semantics<arbitrary>], iteration_bounds = array<i64: 2, 1>, scalar_prefetch = 0 : i64, scratch_operands = 0 : i64, tpu.core_type = #tpu.core_type<tc>, window_params = [{transform_indices = @transform_0, window_bounds = array<i64: 8, 512>}, {transform_indices = @transform_1, window_bounds = array<i64: 8, 512>}, {transform_indices = @transform_2, window_bounds = array<i64: 1, 8, 512>}]} {
    %c0_i32 = arith.constant 0 : i32
    %0 = arith.cmpi eq, %arg1, %c0_i32 : i32
    %1 = arith.extui %0 : i1 to i32
    %c0_i32_0 = arith.constant 0 : i32
    %2 = arith.cmpi ne, %1, %c0_i32_0 : i32
    scf.if %2 {
      %cst_11 = arith.constant 0.000000e+00 : f32
      %18 = vector.broadcast %cst_11 : f32 to vector<1x8x512xf32>
      %c0_12 = arith.constant 0 : index
      %c0_13 = arith.constant 0 : index
      %c0_14 = arith.constant 0 : index
      %19 = vector.load %arg4[%c0_12, %c0_13, %c0_14] : memref<1x8x512xf32, #tpu.memory_space<vmem>>, vector<1x8x512xf32>
      tpu.vector_store %arg4[%c0_12, %c0_13, %c0_14], %18 {strides = array<i32>} : memref<1x8x512xf32, #tpu.memory_space<vmem>>, vector<1x8x512xf32>,
    } else {
    }
    %c0 = arith.constant 0 : index
    %c0_1 = arith.constant 0 : index
    %3 = vector.load %arg2[%c0, %c0_1] : memref<8x512xf32, #tpu.memory_space<vmem>>, vector<8x512xf32>
    %4 = arith.negf %3 : vector<8x512xf32>
    %5 = math.exp %4 : vector<8x512xf32>
    %cst = arith.constant 1.000000e+00 : f32
    %6 = vector.broadcast %cst : f32 to vector<8x512xf32>
    %7 = arith.addf %6, %5 : vector<8x512xf32>
    %8 = arith.divf %6, %7 : vector<8x512xf32>
    %c0_2 = arith.constant 0 : index
    %c0_3 = arith.constant 0 : index
    %9 = vector.load %arg3[%c0_2, %c0_3] : memref<8x512xf32, #tpu.memory_space<vmem>>, vector<8x512xf32>
    %10 = arith.subf %8, %9 : vector<8x512xf32>
    %11 = arith.mulf %10, %10 : vector<8x512xf32>
    %c0_4 = arith.constant 0 : index
    %c0_5 = arith.constant 0 : index
    %c0_6 = arith.constant 0 : index
    %12 = vector.load %arg4[%c0_4, %c0_5, %c0_6] : memref<1x8x512xf32, #tpu.memory_space<vmem>>, vector<1x8x512xf32>
    %13 = vector.shape_cast %11 : vector<8x512xf32> to vector<1x8x512xf32>
    %cst_7 = arith.constant dense<0.000000e+00> : vector<8x512xf32>
    %14 = vector.multi_reduction <add>, %13, %cst_7 [0] : vector<1x8x512xf32> to vector<8x512xf32>
    %15 = vector.shape_cast %14 : vector<8x512xf32> to vector<1x8x512xf32>
    %16 = arith.addf %12, %15 : vector<1x8x512xf32>
    %c0_8 = arith.constant 0 : index
    %c0_9 = arith.constant 0 : index
    %c0_10 = arith.constant 0 : index
    %17 = vector.load %arg4[%c0_8, %c0_9, %c0_10] : memref<1x8x512xf32, #tpu.memory_space<vmem>>, vector<1x8x512xf32>
    tpu.vector_store %arg4[%c0_8, %c0_9, %c0_10], %16 {strides = array<i32>} : memref<1x8x512xf32, #tpu.memory_space<vmem>>, vector<1x8x512xf32>,
    return
  }
  func.func @transform_0(%arg0: i32, %arg1: i32) -> (i32, i32) {
    %c1_i32 = arith.constant 1 : i32
    %0 = arith.muli %arg0, %c1_i32 : i32
    %1 = arith.addi %0, %arg1 : i32
    %c0_i32 = arith.constant 0 : i32
    %c0_i32_0 = arith.constant 0 : i32
    return %1, %c0_i32 : i32, i32
  }
  func.func @transform_1(%arg0: i32, %arg1: i32) -> (i32, i32) {
    %c1_i32 = arith.constant 1 : i32
    %0 = arith.muli %arg0, %c1_i32 : i32
    %1 = arith.addi %0, %arg1 : i32
    %c0_i32 = arith.constant 0 : i32
    %c0_i32_0 = arith.constant 0 : i32
    return %1, %c0_i32 : i32, i32
  }
  func.func @transform_2(%arg0: i32, %arg1: i32) -> (i32, i32, i32) {
    %c0_i32 = arith.constant 0 : i32
    %c0_i32_0 = arith.constant 0 : i32
    %c0_i32_1 = arith.constant 0 : i32
    return %arg0, %c0_i32, %c0_i32_0 : i32, i32, i32
  }
}

</mosaic_0001>

<llo_original>
// kernel: tpu_custom_call.1
$region0: #{tpu_custom_call.1}
  #allocation0 [shape = 'u32[]', space=smem, size = 0x4, offset = 0x4, fixed_abs, tag = 'smem constant byte address 0x4 - core index']
  #allocation1 [shape = 'u32[72,128]{1,0:T(1,128)}', space=vmem, size = 0x9000, scoped, tag = 'internal scratch']
  %s0 = inlined_call_operand.hbm [shape: f32[16,512], index: 0, kind: input, shape index: {}]
  %s1 = inlined_call_operand.hbm [shape: f32[16,512], index: 1, kind: input, shape index: {}]
  %s2 = inlined_call_operand.hbm [shape: f32[2,8,512], index: 2, kind: output, shape index: {}]
  %s3 = sld [smem:[#allocation0]]
  $region53: #{tpu_custom_call.1} parent=0
    _
  %s5 = ssub.s32 1, %s3
  %s6 = scalar_select 0, %s5, %s3
  $region1: #{tpu_custom_call.1} parent=0
    #allocation2 [shape = 'u8[32768]{0}', space=vmem, size = 0x8000, scoped, tag = 'input window, operand 0']
    #allocation3 [shape = 's32[2]{0}', space=sflag, size = 0x8, scoped, tag = 'scoped memory for tpu_custom_call.1']
    #allocation4 [shape = 's32[2]{0}', space=sflag, size = 0x8, scoped, tag = 'scoped memory for tpu_custom_call.1']
    #allocation5 [shape = 'u8[32768]{0}', space=vmem, size = 0x8000, scoped, tag = 'input window, operand 1']
    #allocation6 [shape = 's32[2]{0}', space=sflag, size = 0x8, scoped, tag = 'scoped memory for tpu_custom_call.1']
    #allocation7 [shape = 'u8[32768]{0}', space=vmem, size = 0x8000, scoped, tag = 'output window, operand 0']
    %7 = vsyncpa [#allocation3], 0
    %s8 = scalar_lea.sflag [#allocation3], 1
    %9 = vsyncpa %s8, 0
    %10 = vsyncpa [#allocation6], 0
    %s11 = scalar_lea.sflag [#allocation6], 1
    %12 = vsyncpa %s11, 0
    %13 = vsyncpa [#allocation4], 0
    %s14 = scalar_lea.sflag [#allocation4], 1
    %15 = vsyncpa %s14, 0
    loop: start=0, step=1, limit=4
    $region2: #{tpu_custom_call.1} parent=1 // loop_pre_header
      _
    $region3: #{tpu_custom_call.1} parent=1 // loop_header
      %s17 = sphi 0, %s21
      %p18 = scmp.ge.s32.totalorder %s17, 4
      %s24 = sphi 0, %s36
      %s25 = sphi 0, %s32
      %s26 = sphi 0, %s24
      %s27 = sphi 0, %s25
      %s28 = sphi 0, %s26
      %s29 = sphi 0, %s27
      %s41 = sphi 0, %s43
      %s44 = sphi 0, %s41
      %s45 = sphi 0, %s44
      %s61 = sphi 0, %s45
      %s69 = sphi 0, %s71
      %s72 = sphi 0, %s69
      %s73 = sphi 0, %s72
      %s89 = sphi 0, %s73
      %s95 = sphi 0, %s97
      %s98 = sphi 0, %s95
      %s99 = sphi 0, %s98
      %s115 = sphi 0, %s99
    $region4: #{tpu_custom_call.1} parent=1 // loop_header_branch
      %20 = sbr.rel (%p18) target = $region8
    $region5: #{tpu_custom_call.1} parent=1 // loop_body
      %s22 = ssub.s32 %s17, 1
      %s23 = ssub.s32 %s17, 2
      %s30 = sadd.s32 1, %s25
      %p31 = scmp.ge.s32.totalorder %s30, 1
      %s32 = scalar_select %p31, 0, %s30
      %s33 = sadd.s32 1, %s24
      %s34 = scalar_select %p31, %s33, %s24
      %p35 = scmp.ge.s32.totalorder %s34, 2
      %s36 = scalar_select %p35, 0, %s34
      %s37 = sadd.s32 %s24, %s25
      %s38 = sadd.s32 %s36, %s32
      %s39 = ssub.s32 %s37, %s38
      %p40 = scmp.eq.s32.totalorder %s39, 0
      %s42 = sadd.s32 %s41, 1
      %s43 = scalar_select %p40, %s41, %s42
      %p46 = pneg %p40
      %p47 = scmp.eq.s32.totalorder %s17, 1
      %p48 = por %p46, %p47
      %p49 = scmp.ne.s32.totalorder %s41, %s44
      %p50 = scmp.eq.s32.totalorder %s17, 0
      %p51 = por %p49, %p50
      %p52 = scmp.ne.s32.totalorder %s41, %s44
      %p53 = scmp.eq.s32.totalorder %s22, 1
      %p54 = por %p52, %p53
      %p55 = scmp.ne.s32.totalorder %s44, %s45
      %p56 = scmp.eq.s32.totalorder %s22, 0
      %p57 = por %p55, %p56
      %p58 = scmp.ne.s32.totalorder %s44, %s45
      %p59 = scmp.eq.s32.totalorder %s23, 1
      %p60 = por %p58, %p59
      %p62 = scmp.ne.s32.totalorder %s45, %s61
      %p63 = scmp.eq.s32.totalorder %s23, 0
      %p64 = por %p62, %p63
      %s65 = sadd.s32 %s24, %s25
      %s66 = sadd.s32 %s36, %s32
      %s67 = ssub.s32 %s65, %s66
      %p68 = scmp.eq.s32.totalorder %s67, 0
      %s70 = sadd.s32 %s69, 1
      %s71 = scalar_select %p68, %s69, %s70
      %p74 = pneg %p68
      %p75 = scmp.eq.s32.totalorder %s17, 1
      %p76 = por %p74, %p75
      %p77 = scmp.ne.s32.totalorder %s69, %s72
      %p78 = scmp.eq.s32.totalorder %s17, 0
      %p79 = por %p77, %p78
      %p80 = scmp.ne.s32.totalorder %s69, %s72
      %p81 = scmp.eq.s32.totalorder %s22, 1
      %p82 = por %p80, %p81
      %p83 = scmp.ne.s32.totalorder %s72, %s73
      %p84 = scmp.eq.s32.totalorder %s22, 0
      %p85 = por %p83, %p84
      %p86 = scmp.ne.s32.totalorder %s72, %s73
      %p87 = scmp.eq.s32.totalorder %s23, 1
      %p88 = por %p86, %p87
      %p90 = scmp.ne.s32.totalorder %s73, %s89
      %p91 = scmp.eq.s32.totalorder %s23, 0
      %p92 = por %p90, %p91
      %s93 = ssub.s32 %s24, %s36
      %p94 = scmp.eq.s32.totalorder %s93, 0
      %s96 = sadd.s32 %s95, 1
      %s97 = scalar_select %p94, %s95, %s96
      %p100 = pneg %p94
      %p101 = scmp.eq.s32.totalorder %s17, 1
      %p102 = por %p100, %p101
      %p103 = scmp.ne.s32.totalorder %s95, %s98
      %p104 = scmp.eq.s32.totalorder %s17, 0
      %p105 = por %p103, %p104
      %p106 = scmp.ne.s32.totalorder %s95, %s98
      %p107 = scmp.eq.s32.totalorder %s22, 1
      %p108 = por %p106, %p107
      %p109 = scmp.ne.s32.totalorder %s98, %s99
      %p110 = scmp.eq.s32.totalorder %s22, 0
      %p111 = por %p109, %p110
      %p112 = scmp.ne.s32.totalorder %s98, %s99
      %p113 = scmp.eq.s32.totalorder %s23, 1
      %p114 = por %p112, %p113
      %p116 = scmp.ne.s32.totalorder %s99, %s115
      %p117 = scmp.eq.s32.totalorder %s23, 0
      %p118 = por %p116, %p117
      %p119 = scmp.le.s32.totalorder 1, %s17
      %p120 = scmp.lt.s32.totalorder %s17, 3
      %p121 = pnand %p119, %p120
      %p122 = pneg %p121
      // Predicated region
      $region9: #{tpu_custom_call.1} parent=5 // pred_check
        _
      $region10: #{tpu_custom_call.1} parent=5 // pred_check_branch
        %124 = sbr.rel (%p121) target = $region12
      $region11: #{tpu_custom_call.1} parent=5 // pred_region
        %s125 = ssub.s32 %s17, 1
      $region12: #{tpu_custom_call.1} parent=5 // pred_fallthru
        _
      %p126 = scmp.lt.s32.totalorder %s17, 2
      // Predicated region
      $region13: #{tpu_custom_call.1} parent=5 // pred_check
        %p127 = pneg %p126
      $region14: #{tpu_custom_call.1} parent=5 // pred_check_branch
        %129 = sbr.rel (%p127) target = $region16
      $region15: #{tpu_custom_call.1} parent=5 // pred_region
        // Predicated region
        $region17: #{tpu_custom_call.1} parent=15 // pred_check
          %p130 = pneg %p51
        $region18: #{tpu_custom_call.1} parent=15 // pred_check_branch
          %132 = sbr.rel (%p130) target = $region20
        $region19: #{tpu_custom_call.1} parent=15 // pred_region
          %s133 = sand.u32 %s41, 1
          %s134 = scalar_lea.sflag [#allocation3], %s133
          %s135 = sand.u32 %s41, 1
          %s136 = smul.addr %s135, 32
          %s137 = scalar_lea.vmem [#allocation2], %s136
          %s138 = sadd.s32 %s24, %s25
          %140 = vsyncadd %s134, 0
          %s141 = smul.addr %s138, 4
          %s142 = smul.addr %s141, 8
          %s143 = scalar_lea.hbm %s0, %s142
          %s145 = sshll.u32 %s143, 4
          %s146 = int_to_ptr.hbm [resolvable:$true] %s145
          %s147 = sshll.u32 %s137, 4
          %s148 = int_to_ptr.vmem [resolvable:$true] %s147
          %150 = dma.hbm_to_vmem [thread:$0]  %s146, 512, %s148, %s134
        $region20: #{tpu_custom_call.1} parent=15 // pred_fallthru
          _
        // Predicated region
        $region21: #{tpu_custom_call.1} parent=15 // pred_check
          %p151 = pneg %p79
        $region22: #{tpu_custom_call.1} parent=15 // pred_check_branch
          %153 = sbr.rel (%p151) target = $region24
        $region23: #{tpu_custom_call.1} parent=15 // pred_region
          %s154 = sand.u32 %s69, 1
          %s155 = scalar_lea.sflag [#allocation6], %s154
          %s156 = sand.u32 %s69, 1
          %s157 = smul.addr %s156, 32
          %s158 = scalar_lea.vmem [#allocation5], %s157
          %s159 = sadd.s32 %s24, %s25
          %161 = vsyncadd %s155, 0
          %s162 = smul.addr %s159, 4
          %s163 = smul.addr %s162, 8
          %s164 = scalar_lea.hbm %s1, %s163
          %s166 = sshll.u32 %s164, 4
          %s167 = int_to_ptr.hbm [resolvable:$true] %s166
          %s168 = sshll.u32 %s158, 4
          %s169 = int_to_ptr.vmem [resolvable:$true] %s168
          %171 = dma.hbm_to_vmem [thread:$0]  %s167, 512, %s169, %s155
        $region24: #{tpu_custom_call.1} parent=15 // pred_fallthru
          _
      $region16: #{tpu_custom_call.1} parent=5 // pred_fallthru
        _
      %p172 = scmp.le.s32.totalorder 1, %s17
      %p173 = scmp.lt.s32.totalorder %s17, 3
      %p174 = pnand %p172, %p173
      %p175 = pneg %p174
      // Predicated region
      $region25: #{tpu_custom_call.1} parent=5 // pred_check
        _
      $region26: #{tpu_custom_call.1} parent=5 // pred_check_branch
        %177 = sbr.rel (%p174) target = $region28
      $region27: #{tpu_custom_call.1} parent=5 // pred_region
        %s178 = ssub.s32 %s17, 1
        %s179 = sand.u32 %s44, 1
        %s180 = scalar_lea.sflag [#allocation3], %s179
        %s181 = sand.u32 %s44, 1
        %s182 = smul.addr %s181, 32
        %s183 = scalar_lea.vmem [#allocation2], %s182
        // Predicated region
        $region29: #{tpu_custom_call.1} parent=27 // pred_check
          %p184 = pneg %p57
        $region30: #{tpu_custom_call.1} parent=27 // pred_check_branch
          %186 = sbr.rel (%p184) target = $region32
        $region31: #{tpu_custom_call.1} parent=27 // pred_region
          %188 = dma.done %s180, 512
        $region32: #{tpu_custom_call.1} parent=27 // pred_fallthru
          _
        %s189 = sand.u32 %s72, 1
        %s190 = scalar_lea.sflag [#allocation6], %s189
        %s191 = sand.u32 %s72, 1
        %s192 = smul.addr %s191, 32
        %s193 = scalar_lea.vmem [#allocation5], %s192
        // Predicated region
        $region33: #{tpu_custom_call.1} parent=27 // pred_check
          %p194 = pneg %p85
        $region34: #{tpu_custom_call.1} parent=27 // pred_check_branch
          %196 = sbr.rel (%p194) target = $region36
        $region35: #{tpu_custom_call.1} parent=27 // pred_region
          %198 = dma.done %s190, 512
        $region36: #{tpu_custom_call.1} parent=27 // pred_fallthru
          _
        %s199 = sand.u32 %s44, 1
        %s200 = scalar_lea.sflag [#allocation3], %s199
        %s201 = sand.u32 %s44, 1
        %s202 = smul.addr %s201, 32
        %s203 = scalar_lea.vmem [#allocation2], %s202
        %p204 = pneg %p57
        %p205 = pneg %p54
        %s206 = sand.u32 %s72, 1
        %s207 = scalar_lea.sflag [#allocation6], %s206
        %s208 = sand.u32 %s72, 1
        %s209 = smul.addr %s208, 32
        %s210 = scalar_lea.vmem [#allocation5], %s209
        %p211 = pneg %p85
        %p212 = pneg %p82
        %p213 = pneg %p111
        %p214 = pneg %p108
        %s215 = sand.u32 %s98, 1
        %s216 = scalar_lea.sflag [#allocation4], %s215
        %s217 = sand.u32 %s98, 1
        %s218 = smul.addr %s217, 32
        %s219 = scalar_lea.vmem [#allocation7], %s218
        %s220 = sadd.s32 %s26, %s27
        %s221 = sadd.s32 %s26, %s27
        %p222 = scmp.eq.s32.totalorder %s27, 0
        // Predicated region
        $region37: #{tpu_custom_call.1} parent=27 // pred_check
          %p223 = pneg %p222
        $region38: #{tpu_custom_call.1} parent=27 // pred_check_branch
          %225 = sbr.rel (%p223) target = $region40
        $region39: #{tpu_custom_call.1} parent=27 // pred_region
          %226 = vst [vmem:[%s219] sm:$0xff] 0.0
          %227 = vst [vmem:[%s219 + $0x8] sm:$0xff] 0.0
          %228 = vst [vmem:[%s219 + $0x10] sm:$0xff] 0.0
          %229 = vst [vmem:[%s219 + $0x18] sm:$0xff] 0.0
        $region40: #{tpu_custom_call.1} parent=27 // pred_fallthru
          _
        %v230 = vld [vmem:[%s183] sm:$0xff]
        %v231 = vld [vmem:[%s183 + $0x8] sm:$0xff]
        %v232 = vld [vmem:[%s183 + $0x10] sm:$0xff]
        %v233 = vld [vmem:[%s183 + $0x18] sm:$0xff]
        %v234 = vxor.u32 %v230, 2147483648
        %v235 = vxor.u32 %v231, 2147483648
        %v236 = vxor.u32 %v232, 2147483648
        %v237 = vxor.u32 %v233, 2147483648
        %v238 = vmul.f32 %v234, 1.442695
        %v239 = vpow.pop %v238
        %v240 = vmul.f32 %v235, 1.442695
        %v241 = vpow.pop %v240
        %v242 = vmul.f32 %v236, 1.442695
        %v243 = vpow.pop %v242
        %v244 = vmul.f32 %v237, 1.442695
        %v245 = vpow.pop %v244
        %v246 = vadd.f32 %v239, 1.0
        %v247 = vadd.f32 %v241, 1.0
        %v248 = vadd.f32 %v243, 1.0
        %v249 = vadd.f32 %v245, 1.0
        %v250 = vrcp.pop %v246
        %v251 = vmul.f32 %v246, %v250
        %v252 = vsub.f32 1.0, %v251
        %v253 = vmul.f32 %v250, %v252
        %v254 = vadd.f32 %v250, %v253
        %vm255 = vweird.f32 %v246
        %vm256 = vweird.f32 %v250
        %vm257 = vmor %vm255, %vm256
        %v258 = vsel %vm257, %v250, %v254
        %v259 = vand.u32 2147483647, %v246
        %vm260 = vcmp.eq.f32.partialorder %v259, 8.507059e+37
        %v261 = vand.u32 %v246, 2147483648
        %v262 = vor.u32 1.1754944e-38, %v261
        %v263 = vsel %vm260, %v262, %v258
        %v264 = vmul.f32 1.0, %v263
        %v265 = vrcp.pop %v247
        %v266 = vmul.f32 %v247, %v265
        %v267 = vsub.f32 1.0, %v266
        %v268 = vmul.f32 %v265, %v267
        %v269 = vadd.f32 %v265, %v268
        %vm270 = vweird.f32 %v247
        %vm271 = vweird.f32 %v265
        %vm272 = vmor %vm270, %vm271
        %v273 = vsel %vm272, %v265, %v269
        %v274 = vand.u32 2147483647, %v247
        %vm275 = vcmp.eq.f32.partialorder %v274, 8.507059e+37
        %v276 = vand.u32 %v247, 2147483648
        %v277 = vor.u32 1.1754944e-38, %v276
        %v278 = vsel %vm275, %v277, %v273
        %v279 = vmul.f32 1.0, %v278
        %v280 = vrcp.pop %v248
        %v281 = vmul.f32 %v248, %v280
        %v282 = vsub.f32 1.0, %v281
        %v283 = vmul.f32 %v280, %v282
        %v284 = vadd.f32 %v280, %v283
        %vm285 = vweird.f32 %v248
        %vm286 = vweird.f32 %v280
        %vm287 = vmor %vm285, %vm286
        %v288 = vsel %vm287, %v280, %v284
        %v289 = vand.u32 2147483647, %v248
        %vm290 = vcmp.eq.f32.partialorder %v289, 8.507059e+37
        %v291 = vand.u32 %v248, 2147483648
        %v292 = vor.u32 1.1754944e-38, %v291
        %v293 = vsel %vm290, %v292, %v288
        %v294 = vmul.f32 1.0, %v293
        %v295 = vrcp.pop %v249
        %v296 = vmul.f32 %v249, %v295
        %v297 = vsub.f32 1.0, %v296
        %v298 = vmul.f32 %v295, %v297
        %v299 = vadd.f32 %v295, %v298
        %vm300 = vweird.f32 %v249
        %vm301 = vweird.f32 %v295
        %vm302 = vmor %vm300, %vm301
        %v303 = vsel %vm302, %v295, %v299
        %v304 = vand.u32 2147483647, %v249
        %vm305 = vcmp.eq.f32.partialorder %v304, 8.507059e+37
        %v306 = vand.u32 %v249, 2147483648
        %v307 = vor.u32 1.1754944e-38, %v306
        %v308 = vsel %vm305, %v307, %v303
        %v309 = vmul.f32 1.0, %v308
        %v310 = vld [vmem:[%s193] sm:$0xff]
        %v311 = vld [vmem:[%s193 + $0x8] sm:$0xff]
        %v312 = vld [vmem:[%s193 + $0x10] sm:$0xff]
        %v313 = vld [vmem:[%s193 + $0x18] sm:$0xff]
        %v314 = vsub.f32 %v264, %v310
        %v315 = vsub.f32 %v279, %v311
        %v316 = vsub.f32 %v294, %v312
        %v317 = vsub.f32 %v309, %v313
        %v318 = vmul.f32 %v314, %v314
        %v319 = vmul.f32 %v315, %v315
        %v320 = vmul.f32 %v316, %v316
        %v321 = vmul.f32 %v317, %v317
        %v322 = vld [vmem:[%s219] sm:$0xff]
        %v323 = vld [vmem:[%s219 + $0x8] sm:$0xff]
        %v324 = vld [vmem:[%s219 + $0x10] sm:$0xff]
        %v325 = vld [vmem:[%s219 + $0x18] sm:$0xff]
        %v326 = vadd.f32 %v318, 0.0
        %v327 = vadd.f32 %v319, 0.0
        %v328 = vadd.f32 %v320, 0.0
        %v329 = vadd.f32 %v321, 0.0
        %v330 = vadd.f32 %v322, %v326
        %v331 = vadd.f32 %v323, %v327
        %v332 = vadd.f32 %v324, %v328
        %v333 = vadd.f32 %v325, %v329
        %334 = vst [vmem:[%s219] sm:$0xff] %v330
        %335 = vst [vmem:[%s219 + $0x8] sm:$0xff] %v331
        %336 = vst [vmem:[%s219 + $0x10] sm:$0xff] %v332
        %337 = vst [vmem:[%s219 + $0x18] sm:$0xff] %v333
        %s338 = sand.u32 %s98, 1
        %s339 = scalar_lea.sflag [#allocation4], %s338
        %s340 = sand.u32 %s98, 1
        %s341 = smul.addr %s340, 32
        %s342 = scalar_lea.vmem [#allocation7], %s341
        // Predicated region
        $region41: #{tpu_custom_call.1} parent=27 // pred_check
          %p343 = pneg %p108
        $region42: #{tpu_custom_call.1} parent=27 // pred_check_branch
          %345 = sbr.rel (%p343) target = $region44
        $region43: #{tpu_custom_call.1} parent=27 // pred_region
          %347 = vsyncadd %s339, 0
          %s348 = smul.addr %s26, 4
          %s349 = smul.addr %s348, 8
          %s350 = scalar_lea.hbm %s2, %s349
          %s352 = sshll.u32 %s342, 4
          %s353 = int_to_ptr.vmem [resolvable:$true] %s352
          %s354 = sshll.u32 %s350, 4
          %s355 = int_to_ptr.hbm [resolvable:$true] %s354
          %357 = dma.vmem_to_hbm [thread:$0]  %s353, 512, %s355, %s339
        $region44: #{tpu_custom_call.1} parent=27 // pred_fallthru
          _
      $region28: #{tpu_custom_call.1} parent=5 // pred_fallthru
        _
      %p358 = scmp.le.s32.totalorder 2, %s17
      // Predicated region
      $region45: #{tpu_custom_call.1} parent=5 // pred_check
        %p359 = pneg %p358
      $region46: #{tpu_custom_call.1} parent=5 // pred_check_branch
        %361 = sbr.rel (%p359) target = $region48
      $region47: #{tpu_custom_call.1} parent=5 // pred_region
        %s362 = ssub.s32 %s17, 2
        // Predicated region
        $region49: #{tpu_custom_call.1} parent=47 // pred_check
          %p363 = pneg %p114
        $region50: #{tpu_custom_call.1} parent=47 // pred_check_branch
          %365 = sbr.rel (%p363) target = $region52
        $region51: #{tpu_custom_call.1} parent=47 // pred_region
          %s366 = sand.u32 %s99, 1
          %s367 = scalar_lea.sflag [#allocation4], %s366
          %s368 = sand.u32 %s99, 1
          %s369 = smul.addr %s368, 32
          %s370 = scalar_lea.vmem [#allocation7], %s369
          %372 = dma.done %s367, 512
        $region52: #{tpu_custom_call.1} parent=47 // pred_fallthru
          _
      $region48: #{tpu_custom_call.1} parent=5 // pred_fallthru
        _
    $region6: #{tpu_custom_call.1} parent=1 // loop_footer
      %s21 = sadd.s32 1, %s17
    $region7: #{tpu_custom_call.1} parent=1 // loop_footer_branch
      %16 = sbr.rel target = $region3
    $region8: #{tpu_custom_call.1} parent=1 // loop_exit
      _
    %373 = vsyncpa [#allocation3], 1
    %s374 = scalar_lea.sflag [#allocation3], 1
    %375 = vsyncpa %s374, 1
    %376 = vsyncpa [#allocation6], 1
    %s377 = scalar_lea.sflag [#allocation6], 1
    %378 = vsyncpa %s377, 1
    %379 = vsyncpa [#allocation4], 1
    %s380 = scalar_lea.sflag [#allocation4], 1
    %381 = vsyncpa %s380, 1

</llo_original>
